<compile_context>
chip_gen: v5e
topology: v5e:2x2
jax: 0.10.0
libtpu: 0.0.40
codegen_flags: <defaults>
</compile_context>

<pallas_src>
import functools
import math

import jax
import jax.numpy as jnp
from jax.experimental import pallas as pl
from jax.experimental.pallas import tpu as pltpu


def _cosface_kernel(x_ref, w_ref, label_ref, row_scale_ref, out_ref, *, sm, tn):
    j = pl.program_id(0)

    w = w_ref[...]                                   # (tn, D), f32 or bf16
    w32 = w.astype(jnp.float32)

    # Per-column inverse L2 norm, produced directly in (1, tn) layout via a
    # ones-row matmul (MXU); eps clamp on the SQUARED norm preserves
    # F.normalize(eps=1e-12) semantics.  rsqrt -> EUP slot.
    ones_row = jnp.ones((1, w32.shape[-1]), jnp.float32)
    w_sq = jax.lax.dot_general(
        ones_row, w32 * w32, (((1,), (1,)), ((), ())),
        preferred_element_type=jnp.float32)          # (1, tn)
    col_scale = jax.lax.rsqrt(jnp.maximum(w_sq, 1e-24))   # (1, tn)

    # Main matmul on raw (un-normalized) operands, contracting the last dim of
    # both (no transpose materialized).  Accumulate in f32.
    x = x_ref[...]
    xd = x if x.dtype == w.dtype else x.astype(w.dtype)
    raw = jax.lax.dot_general(
        xd, w, (((1,), (1,)), ((), ())),
        preferred_element_type=jnp.float32)          # (B, tn)

    # row_scale already folds in the CosFace scale s:  s / max(||x_row||, eps)
    logits = raw * row_scale_ref[...] * col_scale    # == s * cosine

    # Margin only on the label column of this tile.
    col = jax.lax.broadcasted_iota(jnp.int32, logits.shape, 1)  # (B, tn)
    is_target = col == (label_ref[...] - j * tn)                # label is (B,1)
    out_ref[...] = jnp.where(is_target, logits - sm, logits).astype(out_ref.dtype)


def cosface_forward(x, weight, label, *, s=64.0, m=0.35, tn_max=1024):
    B, D = x.shape
    N, D2 = weight.shape
    assert D == D2

    # Largest lane-aligned (multiple-of-128) tile that divides N, capped at
    # tn_max; fall back to the full N if N is not a multiple of 128 (a block
    # equal to the full dim is always legal).
    tn_max = max(128, (int(tn_max) // 128) * 128)
    if N % 128 == 0:
        tn = 128
        for cand in range(min(tn_max, N), 127, -128):
            if N % cand == 0:
                tn = cand
                break
    else:
        tn = N

    label2d = label.astype(jnp.int32).reshape(B, 1)

    # Hoisted once per forward (tiny O(B*D) op): s / max(||x_row||, 1e-12).
    x32 = x.astype(jnp.float32)
    row_scale = s * jax.lax.rsqrt(
        jnp.maximum(jnp.sum(x32 * x32, axis=-1, keepdims=True), 1e-24))

    # VMEM budget: double-buffered W tile + resident x/label/row_scale +
    # double-buffered output tile, with headroom; capped for v7x (64 MiB/TC).
    w_bytes = jnp.dtype(weight.dtype).itemsize
    x_bytes = jnp.dtype(x.dtype).itemsize
    need = (2 * tn * D * w_bytes
            + B * D * x_bytes + 2 * B * 4
            + 2 * B * tn * 4)
    vmem_limit = int(min(max(2 * need + (4 << 20), 32 << 20), 64 << 20))

    kernel = functools.partial(_cosface_kernel, sm=float(s) * float(m), tn=tn)

    return pl.pallas_call(
        kernel,
        out_shape=jax.ShapeDtypeStruct((B, N), jnp.float32),
        grid_spec=pltpu.PrefetchScalarGridSpec(
            num_scalar_prefetch=0,
            grid=(N // tn,),
            in_specs=[
                pl.BlockSpec((B, D), lambda j: (0, 0)),    # x: resident every step
                pl.BlockSpec((tn, D), lambda j: (j, 0)),   # W: streamed over out_features
                pl.BlockSpec((B, 1), lambda j: (0, 0)),    # label (int32, resident)
                pl.BlockSpec((B, 1), lambda j: (0, 0)),    # s / ||x_row|| (resident)
            ],
            out_specs=pl.BlockSpec((B, tn), lambda j: (0, j)),
        ),
        compiler_params=pltpu.CompilerParams(
            dimension_semantics=("parallel",),     # N tiles shard across v7x's 2 TCs
            vmem_limit_bytes=vmem_limit,
        ),
    )(x, weight, label2d, row_scale)


def _reference(x, weight, label, s, m):
    xn = x / jnp.maximum(jnp.linalg.norm(x, axis=-1, keepdims=True), 1e-12)
    wn = weight / jnp.maximum(jnp.linalg.norm(weight, axis=-1, keepdims=True), 1e-12)
    cosine = xn @ wn.T
    one_hot = jax.nn.one_hot(label, weight.shape[0], dtype=cosine.dtype)
    return s * (cosine - m * one_hot)


if __name__ == "__main__":
    B, D, N = 8, 128, 256     # batch, in_features, out_features
    s_scale, margin = 64.0, 0.35

    key = jax.random.PRNGKey(0)
    kx, kw, kl = jax.random.split(key, 3)

    x = jax.random.normal(kx, (B, D), dtype=jnp.float32)
    # xavier_uniform_ for weight of shape (out_features, in_features)
    limit = math.sqrt(6.0 / (N + D))
    weight = jax.random.uniform(kw, (N, D), dtype=jnp.float32,
                                minval=-limit, maxval=limit)
    label = jax.random.randint(kl, (B,), 0, N, dtype=jnp.int32)

    ref = _reference(x, weight, label, s_scale, margin)

    # f32 weight path (exact semantics)
    out = cosface_forward(x, weight, label, s=s_scale, m=margin)
    out = jax.block_until_ready(out)
    assert out.shape == (B, N)
    assert jnp.allclose(out, ref, atol=1e-3, rtol=1e-3), "f32 mismatch vs reference"

    # bf16-streamed weights (v6e/v7x HBM-bandwidth lever) -- relaxed tolerance
    out_bf16 = cosface_forward(x, weight.astype(jnp.bfloat16), label,
                               s=s_scale, m=margin)
    out_bf16 = jax.block_until_ready(out_bf16)
    assert out_bf16.shape == (B, N)
    assert jnp.allclose(out_bf16, ref, atol=1.0, rtol=5e-2), "bf16 mismatch vs reference"

    print("KERNEL_OK")
</pallas_src>

<mosaic_0001>
module attributes {stable_mosaic.version = 11 : i64} {
  func.func @_cosface_kernel(%arg0: i32, %arg1: memref<8x128xf32, #tpu.memory_space<vmem>>, %arg2: memref<256x128xf32, #tpu.memory_space<vmem>>, %arg3: memref<8x1xi32, #tpu.memory_space<vmem>>, %arg4: memref<8x1xf32, #tpu.memory_space<vmem>>, %arg5: memref<8x256xf32, #tpu.memory_space<vmem>>) attributes {dimension_semantics = [#tpu.dimension_semantics<parallel>], iteration_bounds = array<i64: 1>, scalar_prefetch = 0 : i64, scratch_operands = 0 : i64, tpu.core_type = #tpu.core_type<tc>, window_params = [{pipeline_mode = #tpu.pipeline_mode<synchronous>, transform_indices = @transform_0, window_bounds = array<i64: 8, 128>}, {transform_indices = @transform_1, window_bounds = array<i64: 256, 128>}, {pipeline_mode = #tpu.pipeline_mode<synchronous>, transform_indices = @transform_2, window_bounds = array<i64: 8, 1>}, {pipeline_mode = #tpu.pipeline_mode<synchronous>, transform_indices = @transform_3, window_bounds = array<i64: 8, 1>}, {transform_indices = @transform_4, window_bounds = array<i64: 8, 256>}]} {
    %c0 = arith.constant 0 : index
    %c0_0 = arith.constant 0 : index
    %0 = vector.load %arg2[%c0, %c0_0] : memref<256x128xf32, #tpu.memory_space<vmem>>, vector<256x128xf32>
    %cst = arith.constant 1.000000e+00 : f32
    %1 = vector.broadcast %cst : f32 to vector<1x128xf32>
    %2 = arith.mulf %0, %0 : vector<256x128xf32>
    %cst_1 = arith.constant dense<0.000000e+00> : vector<1x256xf32>
    %3 = tpu.matmul %1, %2, %cst_1 {dimension_numbers = #tpu.dot_dimension_numbers<[1], [1], [0], [0], [0, 0, 1, 0], [], []>} : vector<1x128xf32>, vector<256x128xf32>, vector<1x256xf32> -> vector<1x256xf32>
    %cst_2 = arith.constant 1.000000e-24 : f32
    %4 = vector.broadcast %cst_2 : f32 to vector<1x256xf32>
    %5 = arith.maximumf %3, %4 : vector<1x256xf32>
    %6 = math.rsqrt %5 : vector<1x256xf32>
    %c0_3 = arith.constant 0 : index
    %c0_4 = arith.constant 0 : index
    %7 = vector.load %arg1[%c0_3, %c0_4] : memref<8x128xf32, #tpu.memory_space<vmem>>, vector<8x128xf32>
    %cst_5 = arith.constant dense<0.000000e+00> : vector<8x256xf32>
    %8 = tpu.matmul %7, %0, %cst_5 {dimension_numbers = #tpu.dot_dimension_numbers<[1], [1], [0], [0], [0, 0, 1, 0], [], []>} : vector<8x128xf32>, vector<256x128xf32>, vector<8x256xf32> -> vector<8x256xf32>
    %c0_6 = arith.constant 0 : index
    %c0_7 = arith.constant 0 : index
    %9 = vector.load %arg4[%c0_6, %c0_7] : memref<8x1xf32, #tpu.memory_space<vmem>>, vector<8x1xf32>
    %10 = vector.broadcast %9 : vector<8x1xf32> to vector<8x256xf32>
    %11 = arith.mulf %8, %10 : vector<8x256xf32>
    %12 = vector.broadcast %6 : vector<1x256xf32> to vector<8x256xf32>
    %13 = arith.mulf %11, %12 : vector<8x256xf32>
    %14 = tpu.iota {dimensions = array<i32: 1>} : vector<8x256xi32>
    %c0_8 = arith.constant 0 : index
    %c0_9 = arith.constant 0 : index
    %15 = vector.load %arg3[%c0_8, %c0_9] : memref<8x1xi32, #tpu.memory_space<vmem>>, vector<8x1xi32>
    %c256_i32 = arith.constant 256 : i32
    %16 = arith.muli %arg0, %c256_i32 : i32
    %17 = vector.broadcast %16 : i32 to vector<8x1xi32>
    %18 = arith.subi %15, %17 : vector<8x1xi32>
    %19 = vector.broadcast %18 : vector<8x1xi32> to vector<8x256xi32>
    %20 = arith.cmpi eq, %14, %19 : vector<8x256xi32>
    %cst_10 = arith.constant 2.240000e+01 : f32
    %21 = vector.broadcast %cst_10 : f32 to vector<8x256xf32>
    %22 = arith.subf %13, %21 : vector<8x256xf32>
    %23 = arith.select %20, %22, %13 : vector<8x256xi1>, vector<8x256xf32>
    %c0_11 = arith.constant 0 : index
    %c0_12 = arith.constant 0 : index
    %24 = vector.load %arg5[%c0_11, %c0_12] : memref<8x256xf32, #tpu.memory_space<vmem>>, vector<8x256xf32>
    tpu.vector_store %arg5[%c0_11, %c0_12], %23 {strides = array<i32>} : memref<8x256xf32, #tpu.memory_space<vmem>>, vector<8x256xf32>,
    return
  }
  func.func @transform_0(%arg0: i32) -> (i32, i32) {
    %c0_i32 = arith.constant 0 : i32
    %c0_i32_0 = arith.constant 0 : i32
    %c0_i32_1 = arith.constant 0 : i32
    return %c0_i32, %c0_i32_0 : i32, i32
  }
  func.func @transform_1(%arg0: i32) -> (i32, i32) {
    %c0_i32 = arith.constant 0 : i32
    %c0_i32_0 = arith.constant 0 : i32
    return %arg0, %c0_i32 : i32, i32
  }
  func.func @transform_2(%arg0: i32) -> (i32, i32) {
    %c0_i32 = arith.constant 0 : i32
    %c0_i32_0 = arith.constant 0 : i32
    %c0_i32_1 = arith.constant 0 : i32
    return %c0_i32, %c0_i32_0 : i32, i32
  }
  func.func @transform_3(%arg0: i32) -> (i32, i32) {
    %c0_i32 = arith.constant 0 : i32
    %c0_i32_0 = arith.constant 0 : i32
    %c0_i32_1 = arith.constant 0 : i32
    return %c0_i32, %c0_i32_0 : i32, i32
  }
  func.func @transform_4(%arg0: i32) -> (i32, i32) {
    %c0_i32 = arith.constant 0 : i32
    %c0_i32_0 = arith.constant 0 : i32
    return %c0_i32, %arg0 : i32, i32
  }
}

</mosaic_0001>

<llo_original>
// kernel: tpu_custom_call.1
$region0: #{tpu_custom_call.1}
  #allocation0 [shape = 'u32[]', space=smem, size = 0x4, offset = 0x4, fixed_abs, tag = 'smem constant byte address 0x4 - core index']
  #allocation1 [shape = 'u32[72,128]{1,0:T(1,128)}', space=vmem, size = 0x9000, scoped, tag = 'internal scratch']
  %s0 = inlined_call_operand.vmem [shape: f32[8,128], index: 0, kind: input, shape index: {}]
  %s1 = inlined_call_operand.hbm [shape: f32[256,128], index: 1, kind: input, shape index: {}]
  %s2 = inlined_call_operand.vmem [shape: s32[8,1], index: 2, kind: input, shape index: {}]
  %s3 = inlined_call_operand.vmem [shape: f32[8,1], index: 3, kind: input, shape index: {}]
  %s4 = inlined_call_operand.hbm [shape: f32[8,256], index: 4, kind: output, shape index: {}]
  %s5 = sld [smem:[#allocation0]]
  $region30: #{tpu_custom_call.1} parent=0
    _
  %s7 = ssub.s32 1, %s5
  %s8 = scalar_select 0, %s7, %s5
  $region1: #{tpu_custom_call.1} parent=0
    #allocation2 [shape = 'u8[131072]{0}', space=vmem, size = 0x20000, scoped, tag = 'input window, operand 1, single buffered']
    #allocation3 [shape = 's32[1]{0}', space=sflag, size = 0x4, scoped, tag = 'scoped memory for tpu_custom_call.1']
    #allocation4 [shape = 's32[1]{0}', space=sflag, size = 0x4, scoped, tag = 'scoped memory for tpu_custom_call.1']
    #allocation5 [shape = 'u8[8192]{0}', space=vmem, size = 0x2000, scoped, tag = 'output window, operand 0, single buffered']
    %9 = vsyncpa [#allocation3], 0
    %10 = vsyncpa [#allocation4], 0
    // Predicated region
    $region2: #{tpu_custom_call.1} parent=1 // pred_check
      _
    $region3: #{tpu_custom_call.1} parent=1 // pred_check_branch
      %12 = sbr.rel (0) target = $region5
    $region4: #{tpu_custom_call.1} parent=1 // pred_region
      _
    $region5: #{tpu_custom_call.1} parent=1 // pred_fallthru
      _
    // Predicated region
    $region6: #{tpu_custom_call.1} parent=1 // pred_check
      _
    $region7: #{tpu_custom_call.1} parent=1 // pred_check_branch
      %14 = sbr.rel (0) target = $region9
    $region8: #{tpu_custom_call.1} parent=1 // pred_region
      %16 = vsyncadd [#allocation3], 0
      %s17 = sshll.u32 %s1, 4
      %s18 = int_to_ptr.hbm [resolvable:$true] %s17
      %s19 = sshll.u32 [#allocation2], 4
      %s20 = int_to_ptr.vmem [resolvable:$true] %s19
      %25 = dma.hbm_to_vmem [thread:$0]  %s18, 4096, %s20, [#allocation3], 128, 128, 8
    $region9: #{tpu_custom_call.1} parent=1 // pred_fallthru
      _
    // Predicated region
    $region10: #{tpu_custom_call.1} parent=1 // pred_check
      _
    $region11: #{tpu_custom_call.1} parent=1 // pred_check_branch
      %27 = sbr.rel (0) target = $region13
    $region12: #{tpu_custom_call.1} parent=1 // pred_region
      _
    $region13: #{tpu_custom_call.1} parent=1 // pred_fallthru
      _
    // Predicated region
    $region14: #{tpu_custom_call.1} parent=1 // pred_check
      _
    $region15: #{tpu_custom_call.1} parent=1 // pred_check_branch
      %29 = sbr.rel (0) target = $region17
    $region16: #{tpu_custom_call.1} parent=1 // pred_region
      _
    $region17: #{tpu_custom_call.1} parent=1 // pred_fallthru
      _
    // Predicated region
    $region18: #{tpu_custom_call.1} parent=1 // pred_check
      _
    $region19: #{tpu_custom_call.1} parent=1 // pred_check_branch
      %31 = sbr.rel (0) target = $region21
    $region20: #{tpu_custom_call.1} parent=1 // pred_region
      %33 = dma.done [#allocation3], 4096
    $region21: #{tpu_custom_call.1} parent=1 // pred_fallthru
      _
    %v34 = vld [vmem:[#allocation2] sm:$0xff]
    %v35 = vld [vmem:[#allocation2 + $0x8] sm:$0xff]
    %v36 = vld [vmem:[#allocation2 + $0x10] sm:$0xff]
    %v37 = vld [vmem:[#allocation2 + $0x18] sm:$0xff]
    %v38 = vld [vmem:[#allocation2 + $0x20] sm:$0xff]
    %v39 = vld [vmem:[#allocation2 + $0x28] sm:$0xff]
    %v40 = vld [vmem:[#allocation2 + $0x30] sm:$0xff]
    %v41 = vld [vmem:[#allocation2 + $0x38] sm:$0xff]
    %v42 = vld [vmem:[#allocation2 + $0x40] sm:$0xff]
    %v43 = vld [vmem:[#allocation2 + $0x48] sm:$0xff]
    %v44 = vld [vmem:[#allocation2 + $0x50] sm:$0xff]
    %v45 = vld [vmem:[#allocation2 + $0x58] sm:$0xff]
    %v46 = vld [vmem:[#allocation2 + $0x60] sm:$0xff]
    %v47 = vld [vmem:[#allocation2 + $0x68] sm:$0xff]
    %v48 = vld [vmem:[#allocation2 + $0x70] sm:$0xff]
    %v49 = vld [vmem:[#allocation2 + $0x78] sm:$0xff]
    %v50 = vld [vmem:[#allocation2 + $0x80] sm:$0xff]
    %v51 = vld [vmem:[#allocation2 + $0x88] sm:$0xff]
    %v52 = vld [vmem:[#allocation2 + $0x90] sm:$0xff]
    %v53 = vld [vmem:[#allocation2 + $0x98] sm:$0xff]
    %v54 = vld [vmem:[#allocation2 + $0xa0] sm:$0xff]
    %v55 = vld [vmem:[#allocation2 + $0xa8] sm:$0xff]
    %v56 = vld [vmem:[#allocation2 + $0xb0] sm:$0xff]
    %v57 = vld [vmem:[#allocation2 + $0xb8] sm:$0xff]
    %v58 = vld [vmem:[#allocation2 + $0xc0] sm:$0xff]
    %v59 = vld [vmem:[#allocation2 + $0xc8] sm:$0xff]
    %v60 = vld [vmem:[#allocation2 + $0xd0] sm:$0xff]
    %v61 = vld [vmem:[#allocation2 + $0xd8] sm:$0xff]
    %v62 = vld [vmem:[#allocation2 + $0xe0] sm:$0xff]
    %v63 = vld [vmem:[#allocation2 + $0xe8] sm:$0xff]
    %v64 = vld [vmem:[#allocation2 + $0xf0] sm:$0xff]
    %v65 = vld [vmem:[#allocation2 + $0xf8] sm:$0xff]
    %v66 = vmul.f32 %v34, %v34
    %v67 = vmul.f32 %v35, %v35
    %v68 = vmul.f32 %v36, %v36
    %v69 = vmul.f32 %v37, %v37
    %v70 = vmul.f32 %v38, %v38
    %v71 = vmul.f32 %v39, %v39
    %v72 = vmul.f32 %v40, %v40
    %v73 = vmul.f32 %v41, %v41
    %v74 = vmul.f32 %v42, %v42
    %v75 = vmul.f32 %v43, %v43
    %v76 = vmul.f32 %v44, %v44
    %v77 = vmul.f32 %v45, %v45
    %v78 = vmul.f32 %v46, %v46
    %v79 = vmul.f32 %v47, %v47
    %v80 = vmul.f32 %v48, %v48
    %v81 = vmul.f32 %v49, %v49
    %v82 = vmul.f32 %v50, %v50
    %v83 = vmul.f32 %v51, %v51
    %v84 = vmul.f32 %v52, %v52
    %v85 = vmul.f32 %v53, %v53
    %v86 = vmul.f32 %v54, %v54
    %v87 = vmul.f32 %v55, %v55
    %v88 = vmul.f32 %v56, %v56
    %v89 = vmul.f32 %v57, %v57
    %v90 = vmul.f32 %v58, %v58
    %v91 = vmul.f32 %v59, %v59
    %v92 = vmul.f32 %v60, %v60
    %v93 = vmul.f32 %v61, %v61
    %v94 = vmul.f32 %v62, %v62
    %v95 = vmul.f32 %v63, %v63
    %v96 = vmul.f32 %v64, %v64
    %v97 = vmul.f32 %v65, %v65
    %98 = vmatpush.xpose.msra.mxu0 %v81
    %99 = vmatpush.xpose.msra.mxu0 %v80
    %100 = vmatpush.xpose.msra.mxu0 %v79
    %101 = vmatpush.xpose.msra.mxu0 %v78
    %102 = vmatpush.xpose.msra.mxu0 %v77
    %103 = vmatpush.xpose.msra.mxu0 %v76
    %104 = vmatpush.xpose.msra.mxu0 %v75
    %105 = vmatpush.xpose.msra.mxu0 %v74
    %106 = vmatpush.xpose.msra.mxu0 %v73
    %107 = vmatpush.xpose.msra.mxu0 %v72
    %108 = vmatpush.xpose.msra.mxu0 %v71
    %109 = vmatpush.xpose.msra.mxu0 %v70
    %110 = vmatpush.xpose.msra.mxu0 %v69
    %111 = vmatpush.xpose.msra.mxu0 %v68
    %112 = vmatpush.xpose.msra.mxu0 %v67
    %113 = vmatpush.xpose.msra.mxu0 %v66
    %114 = vmatmul.f32.gmra.mxu0 1.0
    %v115 = vpop.f32.mrf.mxu0
    %v116 = vadd.f32 0.0, %v115
    %117 = vdwg.mxu0
    %118 = vmatpush.xpose.msra.mxu0 %v97
    %119 = vmatpush.xpose.msra.mxu0 %v96
    %120 = vmatpush.xpose.msra.mxu0 %v95
    %121 = vmatpush.xpose.msra.mxu0 %v94
    %122 = vmatpush.xpose.msra.mxu0 %v93
    %123 = vmatpush.xpose.msra.mxu0 %v92
    %124 = vmatpush.xpose.msra.mxu0 %v91
    %125 = vmatpush.xpose.msra.mxu0 %v90
    %126 = vmatpush.xpose.msra.mxu0 %v89
    %127 = vmatpush.xpose.msra.mxu0 %v88
    %128 = vmatpush.xpose.msra.mxu0 %v87
    %129 = vmatpush.xpose.msra.mxu0 %v86
    %130 = vmatpush.xpose.msra.mxu0 %v85
    %131 = vmatpush.xpose.msra.mxu0 %v84
    %132 = vmatpush.xpose.msra.mxu0 %v83
    %133 = vmatpush.xpose.msra.mxu0 %v82
    %134 = vmatmul.f32.gmra.mxu0 1.0
    %v135 = vpop.f32.mrf.mxu0
    %v136 = vadd.f32 0.0, %v135
    %137 = vdwg.mxu0
    %v138 = vmax.f32 %v116, 1e-24
    %v139 = vmax.f32 %v136, 1e-24
    %v140 = vrsqrt.pop %v138
    %v141 = vmul.f32 %v140, %v138
    %v142 = vmul.f32 %v141, %v140
    %v143 = vmul.f32 0.5, %v142
    %v144 = vsub.f32 1.5, %v143
    %v145 = vmul.f32 %v140, %v144
    %vm146 = vweird.f32 %v138
    %vm147 = vweird.f32 %v140
    %vm148 = vmor %vm146, %vm147
    %v149 = vsel %vm148, %v140, %v145
    %v150 = vrsqrt.pop %v139
    %v151 = vmul.f32 %v150, %v139
    %v152 = vmul.f32 %v151, %v150
    %v153 = vmul.f32 0.5, %v152
    %v154 = vsub.f32 1.5, %v153
    %v155 = vmul.f32 %v150, %v154
    %vm156 = vweird.f32 %v139
    %vm157 = vweird.f32 %v150
    %vm158 = vmor %vm156, %vm157
    %v159 = vsel %vm158, %v150, %v155
    %v160 = vld [vmem:[%s0] sm:$0xff]
    %161 = vmatpush.xpose.msra.mxu0 %v49
    %162 = vmatpush.xpose.msra.mxu0 %v48
    %163 = vmatpush.xpose.msra.mxu0 %v47
    %164 = vmatpush.xpose.msra.mxu0 %v46
    %165 = vmatpush.xpose.msra.mxu0 %v45
    %166 = vmatpush.xpose.msra.mxu0 %v44
    %167 = vmatpush.xpose.msra.mxu0 %v43
    %168 = vmatpush.xpose.msra.mxu0 %v42
    %169 = vmatpush.xpose.msra.mxu0 %v41
    %170 = vmatpush.xpose.msra.mxu0 %v40
    %171 = vmatpush.xpose.msra.mxu0 %v39
    %172 = vmatpush.xpose.msra.mxu0 %v38
    %173 = vmatpush.xpose.msra.mxu0 %v37
    %174 = vmatpush.xpose.msra.mxu0 %v36
    %175 = vmatpush.xpose.msra.mxu0 %v35
    %176 = vmatpush.xpose.msra.mxu0 %v34
    %177 = vmatmul.f32.gmra.mxu0 %v160
    %v178 = vpop.f32.mrf.mxu0
    %v179 = vadd.f32 0.0, %v178
    %180 = vdwg.mxu0
    %181 = vmatpush.xpose.msra.mxu0 %v65
    %182 = vmatpush.xpose.msra.mxu0 %v64
    %183 = vmatpush.xpose.msra.mxu0 %v63
    %184 = vmatpush.xpose.msra.mxu0 %v62
    %185 = vmatpush.xpose.msra.mxu0 %v61
    %186 = vmatpush.xpose.msra.mxu0 %v60
    %187 = vmatpush.xpose.msra.mxu0 %v59
    %188 = vmatpush.xpose.msra.mxu0 %v58
    %189 = vmatpush.xpose.msra.mxu0 %v57
    %190 = vmatpush.xpose.msra.mxu0 %v56
    %191 = vmatpush.xpose.msra.mxu0 %v55
    %192 = vmatpush.xpose.msra.mxu0 %v54
    %193 = vmatpush.xpose.msra.mxu0 %v53
    %194 = vmatpush.xpose.msra.mxu0 %v52
    %195 = vmatpush.xpose.msra.mxu0 %v51
    %196 = vmatpush.xpose.msra.mxu0 %v50
    %197 = vmatmul.f32.gmra.mxu0 %v160
    %v198 = vpop.f32.mrf.mxu0
    %v199 = vadd.f32 0.0, %v198
    %200 = vdwg.mxu0
    %v201 = vld [vmem:[%s3] sm:$0xff]
    %203 = vset.pattern.permute.xlu0 0
    %204 = vperm.xlu0 %203, %v201
    %v205 = vpop.permute.xlu0 %204
    %v207 = vmul.f32 %v179, %v205
    %v208 = vmul.f32 %v199, %v205
    %v209 = vperm.slane %v149, 0
    %v210 = vperm.slane %v159, 0
    %v211 = vmul.f32 %v207, %v209
    %v212 = vmul.f32 %v208, %v210
    %v213 = vlaneseq
    %v214 = vand.u32 %v213, 127
    %v215 = vadd.s32 %v214, 128
    %v216 = vld [vmem:[%s2] sm:$0xff]
    %s217 = smul.u32 0, 256
    %v218 = vstv %s217
    %v219 = vsub.s32 %v216, %v218
    %220 = vset.pattern.permute.xlu0 0
    %221 = vperm.xlu0 %220, %v219
    %v222 = vpop.permute.xlu0 %221
    %vm223 = vcmp.eq.s32.totalorder %v214, %v222
    %vm224 = vcmp.eq.s32.totalorder %v215, %v222
    %v225 = vsub.f32 %v211, 22.4
    %v226 = vsub.f32 %v212, 22.4
    %v227 = vsel %vm223, %v225, %v211
    %v228 = vsel %vm224, %v226, %v212
    %229 = vst [vmem:[#allocation5] sm:$0xff] %v227
    %230 = vst [vmem:[#allocation5 + $0x8] sm:$0xff] %v228
    // Predicated region
    $region22: #{tpu_custom_call.1} parent=1 // pred_check
      _
    $region23: #{tpu_custom_call.1} parent=1 // pred_check_branch
      %232 = sbr.rel (0) target = $region25
    $region24: #{tpu_custom_call.1} parent=1 // pred_region
      %234 = vsyncadd [#allocation4], 0
      %s236 = sshll.u32 [#allocation5], 4
      %s237 = int_to_ptr.vmem [resolvable:$true] %s236
      %s238 = sshll.u32 %s4, 4
      %s239 = int_to_ptr.hbm [resolvable:$true] %s238
      %241 = dma.vmem_to_hbm [thread:$0]  %s237, 256, %s239, [#allocation4]
    $region25: #{tpu_custom_call.1} parent=1 // pred_fallthru
      _
    // Predicated region
    $region26: #{tpu_custom_call.1} parent=1 // pred_check
      _
    $region27: #{tpu_custom_call.1} parent=1 // pred_check_branch
      %243 = sbr.rel (0) target = $region29
    $region28: #{tpu_custom_call.1} parent=1 // pred_region
      %245 = dma.done [#allocation4], 256
    $region29: #{tpu_custom_call.1} parent=1 // pred_fallthru
      _
    %246 = vsyncpa [#allocation3], 1
    %247 = vsyncpa [#allocation4], 1

</llo_original>
